<compile_context>
chip_gen: v5e
topology: v5e:2x2
jax: 0.10.0
libtpu: 0.0.40
codegen_flags: <defaults>
</compile_context>

<pallas_src>
import functools

import jax
import jax.numpy as jnp
from jax.experimental import pallas as pl
from jax.experimental.pallas import tpu as pltpu

N_BINS = 20
_LANES = 128  # lane-pad the bin axis for dense vector ops / unmasked stores


def _round_up(x, m):
    return ((x + m - 1) // m) * m


def _ece_hist_kernel(logits_ref, labels_ref, stats_ref, *, n_rows, n_bins,
                     tiles_per_slice, tile_n):
    p = pl.program_id(0)          # parallel slice (TensorCore split)
    i = pl.program_id(1)          # reduction step within the slice

    # Zero the resident per-slice accumulator at the first reduction step.
    @pl.when(i == 0)
    def _():
        stats_ref[...] = jnp.zeros_like(stats_ref)

    x = logits_ref[...].astype(jnp.float32)                 # (tile_n, C)
    tn, c = x.shape

    # confidences / predictions = torch.max(logits, 1) (first index on ties).
    conf = jnp.max(x, axis=1, keepdims=True)                 # (tile_n, 1)
    col = jax.lax.broadcasted_iota(jnp.int32, (tn, c), 1)
    pred = jnp.min(jnp.where(x == conf, col, c), axis=1, keepdims=True)

    labels = labels_ref[...]                                 # (tile_n, 1) int32
    acc = (pred == labels).astype(jnp.float32)               # (tile_n, 1)

    # Mask rows beyond the real N (partial last tile / clamped duplicate tiles).
    row0 = (p * tiles_per_slice + i) * tile_n
    row = row0 + jax.lax.broadcasted_iota(jnp.int32, (tn, 1), 0)
    conf = jnp.where(row < n_rows, conf, -1.0)               # -1 falls in no bin

    # Lane-padded bin edges; padded bins (>= n_bins) are made impossible.
    b = jax.lax.broadcasted_iota(jnp.int32, (1, _LANES), 1)
    bf = b.astype(jnp.float32)
    valid_bin = b < n_bins
    lowers = jnp.where(valid_bin, bf / n_bins, 1.0)
    uppers = jnp.where(valid_bin, (bf + 1.0) / n_bins, 0.0)

    # Membership matrix (tile_n, 128): conf > lower AND conf <= upper.
    in_bin = jnp.logical_and(conf > lowers, conf <= uppers).astype(jnp.float32)

    count = jnp.sum(in_bin, axis=0, keepdims=True)           # (1, 128)
    s_acc = jnp.sum(acc * in_bin, axis=0, keepdims=True)     # (1, 128)
    s_conf = jnp.sum(conf * in_bin, axis=0, keepdims=True)   # (1, 128)

    # One full-tile (8, 128) unmasked accumulate instead of three 1-sublane RMWs.
    update = jnp.concatenate(
        [count, s_acc, s_conf, jnp.zeros((5, _LANES), jnp.float32)], axis=0)
    stats_ref[...] += update


def ece_loss(logits, labels, n_bins=N_BINS, temperature=1, *, _tile_n=None):
    """Pallas equivalent of ECELoss.forward. Returns (ece: (1,) f32, ys: list of floats)."""
    del temperature  # unused in the reference forward pass
    assert n_bins <= _LANES
    n, c = logits.shape
    labels2d = labels.reshape(n, 1).astype(jnp.int32)

    # Tile the sample axis: largest multiple-of-8 row count such that a
    # double-buffered native-dtype logits tile plus its f32 temporaries stays
    # well inside the scoped-VMEM budget on all of v5e / v6e / v7x.
    if _tile_n is not None:
        tile_n = int(_tile_n)
        assert tile_n % 8 == 0
    else:
        row_bytes = max(1, c * jnp.dtype(logits.dtype).itemsize)
        cap = max(8, ((3 * 1024 * 1024) // row_bytes) // 8 * 8)
        tile_n = int(min(512, _round_up(n, 8), cap))

    total_tiles = pl.cdiv(n, tile_n)
    n_par = 2 if total_tiles >= 2 else 1      # 2 TensorCores on v7x
    tiles_per_slice = pl.cdiv(total_tiles, n_par)

    def data_index_map(p, i):
        # Clamp so logical tiles past the end re-read the last real tile;
        # their rows are masked out inside the kernel (no double counting).
        return (jnp.minimum(p * tiles_per_slice + i, total_tiles - 1), 0)

    kernel = functools.partial(
        _ece_hist_kernel, n_rows=n, n_bins=n_bins,
        tiles_per_slice=tiles_per_slice, tile_n=tile_n)

    stats = pl.pallas_call(
        kernel,
        out_shape=jax.ShapeDtypeStruct((n_par, 8, _LANES), jnp.float32),
        grid=(n_par, tiles_per_slice),
        in_specs=[
            pl.BlockSpec((tile_n, c), data_index_map),   # logits, native dtype
            pl.BlockSpec((tile_n, 1), data_index_map),   # labels (N, 1) int32
        ],
        out_specs=pl.BlockSpec((None, 8, _LANES), lambda p, i: (p, 0, 0)),
        compiler_params=pltpu.CompilerParams(
            dimension_semantics=("parallel", "arbitrary"),
            vmem_limit_bytes=32 * 1024 * 1024,
        ),
    )(logits, labels2d)

    # Tiny (3, n_bins) finalize in plain JAX: combine parallel-slice partials,
    # divide once, take |.| and the ece sum with the GLOBAL sample count.
    totals = jnp.sum(stats, axis=0)                  # (8, 128)
    count = totals[0, :n_bins]
    s_acc = totals[1, :n_bins]
    s_conf = totals[2, :n_bins]
    nonempty = count > 0.0
    safe = jnp.where(nonempty, count, 1.0)
    avg_acc = jnp.where(nonempty, s_acc / safe, 0.0)     # ys
    avg_conf = jnp.where(nonempty, s_conf / safe, 0.0)
    prop = count / float(n)
    ece = jnp.sum(jnp.where(nonempty, jnp.abs(avg_conf - avg_acc) * prop, 0.0))
    ece = ece.reshape(1)
    ys = [float(a) for a in jax.device_get(avg_acc)]
    return ece, ys


def _reference(logits, labels, n_bins=N_BINS):
    """Pure-JAX reference mirroring the PyTorch loop, for verification."""
    logits = jnp.asarray(logits, jnp.float32)
    conf = jnp.max(logits, axis=1)
    pred = jnp.argmax(logits, axis=1)
    acc = (pred == labels).astype(jnp.float32)
    bounds = jnp.linspace(0.0, 1.0, n_bins + 1)
    ece = 0.0
    ys = []
    for i in range(n_bins):
        lo, hi = float(bounds[i]), float(bounds[i + 1])
        in_bin = (conf > lo) & (conf <= hi)
        cnt = float(jnp.sum(in_bin))
        prop = cnt / conf.shape[0]
        if cnt > 0:
            a = float(jnp.sum(acc * in_bin) / cnt)
            c = float(jnp.sum(conf * in_bin) / cnt)
            ece += abs(c - a) * prop
            ys.append(a)
        else:
            ys.append(0.0)
    return ece, ys


if __name__ == "__main__":
    key = jax.random.PRNGKey(0)
    k1, k2, k3, k4 = jax.random.split(key, 4)

    # Small, module-consistent shapes: 8 samples x 16 classes (single tile).
    # Raw "logits" pre-scaled into [0, 1] so the calibration bins are exercised,
    # matching the usual case where probabilities are fed to ECELoss.
    N, C = 8, 16
    logits = jax.nn.softmax(jax.random.normal(k1, (N, C), jnp.float32) * 2.0, axis=-1)
    labels = jax.random.randint(k2, (N,), 0, C, dtype=jnp.int32)

    ece, ys = ece_loss(logits, labels)
    jax.block_until_ready(ece)
    ref_ece, ref_ys = _reference(logits, labels)
    assert abs(float(ece[0]) - ref_ece) < 1e-5, (float(ece[0]), ref_ece)
    for a, b in zip(ys, ref_ys):
        assert abs(a - b) < 1e-5, (a, b)

    # Exercise the tiled / parallel-split / row-masked path (still small).
    N2, C2 = 40, 16
    logits2 = jax.nn.softmax(jax.random.normal(k3, (N2, C2), jnp.float32) * 2.0, axis=-1)
    labels2 = jax.random.randint(k4, (N2,), 0, C2, dtype=jnp.int32)
    ece2, ys2 = ece_loss(logits2, labels2, _tile_n=8)
    jax.block_until_ready(ece2)
    ref_ece2, ref_ys2 = _reference(logits2, labels2)
    assert abs(float(ece2[0]) - ref_ece2) < 1e-5, (float(ece2[0]), ref_ece2)
    for a, b in zip(ys2, ref_ys2):
        assert abs(a - b) < 1e-5, (a, b)

    print("KERNEL_OK")
</pallas_src>

<mosaic_0001>
module attributes {stable_mosaic.version = 11 : i64} {
  func.func @_ece_hist_kernel(%arg0: i32, %arg1: i32, %arg2: memref<8x16xf32, #tpu.memory_space<vmem>>, %arg3: memref<8x1xi32, #tpu.memory_space<vmem>>, %arg4: memref<1x8x128xf32, #tpu.memory_space<vmem>>) attributes {dimension_semantics = [#tpu.dimension_semantics<parallel>, #tpu.dimension_semantics<arbitrary>], iteration_bounds = array<i64: 1, 1>, scalar_prefetch = 0 : i64, scratch_operands = 0 : i64, tpu.core_type = #tpu.core_type<tc>, window_params = [{transform_indices = @transform_0, window_bounds = array<i64: 8, 16>}, {transform_indices = @transform_1, window_bounds = array<i64: 8, 1>}, {transform_indices = @transform_2, window_bounds = array<i64: 1, 8, 128>}]} {
    %c0_i32 = arith.constant 0 : i32
    %0 = arith.cmpi eq, %arg1, %c0_i32 : i32
    %1 = arith.extui %0 : i1 to i32
    %c0_i32_0 = arith.constant 0 : i32
    %2 = arith.cmpi ne, %1, %c0_i32_0 : i32
    scf.if %2 {
      %cst_22 = arith.constant 0.000000e+00 : f32
      %68 = vector.broadcast %cst_22 : f32 to vector<8x128xf32>
      %c0_23 = arith.constant 0 : index
      %c0_24 = arith.constant 0 : index
      %c0_25 = arith.constant 0 : index
      %69 = vector.load %arg4[%c0_23, %c0_24, %c0_25] : memref<1x8x128xf32, #tpu.memory_space<vmem>>, vector<1x8x128xf32>
      %70 = vector.shape_cast %69 : vector<1x8x128xf32> to vector<8x128xf32>
      %71 = vector.shape_cast %68 : vector<8x128xf32> to vector<1x8x128xf32>
      tpu.vector_store %arg4[%c0_23, %c0_24, %c0_25], %71 {strides = array<i32>} : memref<1x8x128xf32, #tpu.memory_space<vmem>>, vector<1x8x128xf32>,
    } else {
    }
    %c0 = arith.constant 0 : index
    %c0_1 = arith.constant 0 : index
    %3 = vector.load %arg2[%c0, %c0_1] : memref<8x16xf32, #tpu.memory_space<vmem>>, vector<8x16xf32>
    %cst = arith.constant dense<0xFF800000> : vector<8xf32>
    %4 = vector.multi_reduction <maximumf>, %3, %cst [1] : vector<8x16xf32> to vector<8xf32>
    %5 = vector.shape_cast %4 : vector<8xf32> to vector<8x1xf32>
    %6 = tpu.iota {dimensions = array<i32: 1>} : vector<8x16xi32>
    %7 = vector.broadcast %5 : vector<8x1xf32> to vector<8x16xf32>
    %8 = arith.cmpf oeq, %3, %7 : vector<8x16xf32>
    %c16_i32 = arith.constant 16 : i32
    %9 = vector.broadcast %c16_i32 : i32 to vector<8x16xi32>
    %10 = arith.select %8, %6, %9 : vector<8x16xi1>, vector<8x16xi32>
    %cst_2 = arith.constant dense<2147483647> : vector<8xi32>
    %11 = vector.multi_reduction <minsi>, %10, %cst_2 [1] : vector<8x16xi32> to vector<8xi32>
    %12 = vector.shape_cast %11 : vector<8xi32> to vector<8x1xi32>
    %c0_3 = arith.constant 0 : index
    %c0_4 = arith.constant 0 : index
    %13 = vector.load %arg3[%c0_3, %c0_4] : memref<8x1xi32, #tpu.memory_space<vmem>>, vector<8x1xi32>
    %14 = arith.cmpi eq, %12, %13 : vector<8x1xi32>
    %15 = arith.extui %14 : vector<8x1xi1> to vector<8x1xi32>
    %16 = arith.sitofp %15 : vector<8x1xi32> to vector<8x1xf32>
    %c1_i32 = arith.constant 1 : i32
    %17 = arith.muli %arg0, %c1_i32 : i32
    %18 = arith.addi %17, %arg1 : i32
    %c8_i32 = arith.constant 8 : i32
    %19 = arith.muli %18, %c8_i32 : i32
    %20 = tpu.iota {dimensions = array<i32: 0>} : vector<8x1xi32>
    %21 = vector.broadcast %19 : i32 to vector<8x1xi32>
    %22 = arith.addi %21, %20 : vector<8x1xi32>
    %c8_i32_5 = arith.constant 8 : i32
    %23 = vector.broadcast %c8_i32_5 : i32 to vector<8x1xi32>
    %24 = arith.cmpi slt, %22, %23 : vector<8x1xi32>
    %cst_6 = arith.constant -1.000000e+00 : f32
    %25 = vector.broadcast %cst_6 : f32 to vector<8x1xf32>
    %26 = arith.select %24, %5, %25 : vector<8x1xi1>, vector<8x1xf32>
    %27 = tpu.iota {dimensions = array<i32: 1>} : vector<1x128xi32>
    %28 = arith.sitofp %27 : vector<1x128xi32> to vector<1x128xf32>
    %c20_i32 = arith.constant 20 : i32
    %29 = vector.broadcast %c20_i32 : i32 to vector<1x128xi32>
    %30 = arith.cmpi slt, %27, %29 : vector<1x128xi32>
    %cst_7 = arith.constant 2.000000e+01 : f32
    %31 = vector.broadcast %cst_7 : f32 to vector<1x128xf32>
    %32 = arith.divf %28, %31 : vector<1x128xf32>
    %cst_8 = arith.constant 1.000000e+00 : f32
    %33 = vector.broadcast %cst_8 : f32 to vector<1x128xf32>
    %34 = arith.select %30, %32, %33 : vector<1x128xi1>, vector<1x128xf32>
    %cst_9 = arith.constant 1.000000e+00 : f32
    %35 = vector.broadcast %cst_9 : f32 to vector<1x128xf32>
    %36 = arith.addf %28, %35 : vector<1x128xf32>
    %cst_10 = arith.constant 2.000000e+01 : f32
    %37 = vector.broadcast %cst_10 : f32 to vector<1x128xf32>
    %38 = arith.divf %36, %37 : vector<1x128xf32>
    %cst_11 = arith.constant 0.000000e+00 : f32
    %39 = vector.broadcast %cst_11 : f32 to vector<1x128xf32>
    %40 = arith.select %30, %38, %39 : vector<1x128xi1>, vector<1x128xf32>
    %41 = vector.broadcast %26 : vector<8x1xf32> to vector<8x128xf32>
    %42 = vector.broadcast %34 : vector<1x128xf32> to vector<8x128xf32>
    %43 = arith.cmpf ogt, %41, %42 : vector<8x128xf32>
    %44 = vector.broadcast %26 : vector<8x1xf32> to vector<8x128xf32>
    %45 = vector.broadcast %40 : vector<1x128xf32> to vector<8x128xf32>
    %46 = arith.cmpf ole, %44, %45 : vector<8x128xf32>
    %47 = arith.andi %43, %46 : vector<8x128xi1>
    %48 = arith.extui %47 : vector<8x128xi1> to vector<8x128xi32>
    %49 = arith.sitofp %48 : vector<8x128xi32> to vector<8x128xf32>
    %cst_12 = arith.constant dense<0.000000e+00> : vector<128xf32>
    %50 = vector.multi_reduction <add>, %49, %cst_12 [0] : vector<8x128xf32> to vector<128xf32>
    %51 = vector.shape_cast %50 : vector<128xf32> to vector<1x128xf32>
    %52 = vector.broadcast %16 : vector<8x1xf32> to vector<8x128xf32>
    %53 = arith.mulf %52, %49 : vector<8x128xf32>
    %cst_13 = arith.constant dense<0.000000e+00> : vector<128xf32>
    %54 = vector.multi_reduction <add>, %53, %cst_13 [0] : vector<8x128xf32> to vector<128xf32>
    %55 = vector.shape_cast %54 : vector<128xf32> to vector<1x128xf32>
    %56 = vector.broadcast %26 : vector<8x1xf32> to vector<8x128xf32>
    %57 = arith.mulf %56, %49 : vector<8x128xf32>
    %cst_14 = arith.constant dense<0.000000e+00> : vector<128xf32>
    %58 = vector.multi_reduction <add>, %57, %cst_14 [0] : vector<8x128xf32> to vector<128xf32>
    %59 = vector.shape_cast %58 : vector<128xf32> to vector<1x128xf32>
    %cst_15 = arith.constant 0.000000e+00 : f32
    %60 = vector.broadcast %cst_15 : f32 to vector<5x128xf32>
    %61 = tpu.concatenate %51, %55, %59, %60 in 0 : vector<1x128xf32>, vector<1x128xf32>, vector<1x128xf32>, vector<5x128xf32> -> vector<8x128xf32>
    %c0_16 = arith.constant 0 : index
    %c0_17 = arith.constant 0 : index
    %c0_18 = arith.constant 0 : index
    %62 = vector.load %arg4[%c0_16, %c0_17, %c0_18] : memref<1x8x128xf32, #tpu.memory_space<vmem>>, vector<1x8x128xf32>
    %63 = vector.shape_cast %62 : vector<1x8x128xf32> to vector<8x128xf32>
    %64 = arith.addf %63, %61 : vector<8x128xf32>
    %c0_19 = arith.constant 0 : index
    %c0_20 = arith.constant 0 : index
    %c0_21 = arith.constant 0 : index
    %65 = vector.load %arg4[%c0_19, %c0_20, %c0_21] : memref<1x8x128xf32, #tpu.memory_space<vmem>>, vector<1x8x128xf32>
    %66 = vector.shape_cast %65 : vector<1x8x128xf32> to vector<8x128xf32>
    %67 = vector.shape_cast %64 : vector<8x128xf32> to vector<1x8x128xf32>
    tpu.vector_store %arg4[%c0_19, %c0_20, %c0_21], %67 {strides = array<i32>} : memref<1x8x128xf32, #tpu.memory_space<vmem>>, vector<1x8x128xf32>,
    return
  }
  func.func @transform_0(%arg0: i32, %arg1: i32) -> (i32, i32) {
    %c1_i32 = arith.constant 1 : i32
    %0 = arith.muli %arg0, %c1_i32 : i32
    %1 = arith.addi %0, %arg1 : i32
    %c0_i32 = arith.constant 0 : i32
    %2 = arith.minsi %1, %c0_i32 : i32
    %c0_i32_0 = arith.constant 0 : i32
    %c0_i32_1 = arith.constant 0 : i32
    return %2, %c0_i32_0 : i32, i32
  }
  func.func @transform_1(%arg0: i32, %arg1: i32) -> (i32, i32) {
    %c1_i32 = arith.constant 1 : i32
    %0 = arith.muli %arg0, %c1_i32 : i32
    %1 = arith.addi %0, %arg1 : i32
    %c0_i32 = arith.constant 0 : i32
    %2 = arith.minsi %1, %c0_i32 : i32
    %c0_i32_0 = arith.constant 0 : i32
    %c0_i32_1 = arith.constant 0 : i32
    return %2, %c0_i32_0 : i32, i32
  }
  func.func @transform_2(%arg0: i32, %arg1: i32) -> (i32, i32, i32) {
    %c0_i32 = arith.constant 0 : i32
    %c0_i32_0 = arith.constant 0 : i32
    %c0_i32_1 = arith.constant 0 : i32
    return %arg0, %c0_i32, %c0_i32_0 : i32, i32, i32
  }
}

</mosaic_0001>

<llo_original>
// kernel: tpu_custom_call.1
$region0: #{tpu_custom_call.1}
  #allocation0 [shape = 'u32[]', space=smem, size = 0x4, offset = 0x4, fixed_abs, tag = 'smem constant byte address 0x4 - core index']
  #allocation1 [shape = 'u32[72,128]{1,0:T(1,128)}', space=vmem, size = 0x9000, scoped, tag = 'internal scratch']
  %s0 = inlined_call_operand.vmem [shape: f32[8,16], index: 0, kind: input, shape index: {}]
  %s1 = inlined_call_operand.vmem [shape: s32[8,1], index: 1, kind: input, shape index: {}]
  %s2 = inlined_call_operand.hbm [shape: f32[1,8,128], index: 2, kind: output, shape index: {}]
  %s3 = sld [smem:[#allocation0]]
  $region22: #{tpu_custom_call.1} parent=0
    _
  %s5 = ssub.s32 1, %s3
  %s6 = scalar_select 0, %s5, %s3
  $region1: #{tpu_custom_call.1} parent=0
    #allocation2 [shape = 'u8[4096]{0}', space=vmem, size = 0x1000, scoped, tag = 'output window, operand 0, single buffered']
    #allocation3 [shape = 's32[1]{0}', space=sflag, size = 0x4, scoped, tag = 'scoped memory for tpu_custom_call.1']
    %7 = vsyncpa [#allocation3], 0
    // Predicated region
    $region2: #{tpu_custom_call.1} parent=1 // pred_check
      _
    $region3: #{tpu_custom_call.1} parent=1 // pred_check_branch
      %9 = sbr.rel (0) target = $region5
    $region4: #{tpu_custom_call.1} parent=1 // pred_region
      %s10 = sadd.s32 0, 0
      %p11 = scmp.lt.s32.totalorder %s10, 0
      %s12 = scalar_select %p11, %s10, 0
      %p13 = scmp.lt.s32.totalorder %s12, 0
      %s14 = scalar_select %p13, %s12, 0
      %s15 = smul.addr %s14, 8
      %s16 = scalar_lea.vmem %s0, %s15
      %s17 = sadd.s32 0, 0
      %p18 = scmp.lt.s32.totalorder %s17, 0
      %s19 = scalar_select %p18, %s17, 0
    $region5: #{tpu_custom_call.1} parent=1 // pred_fallthru
      _
    // Predicated region
    $region6: #{tpu_custom_call.1} parent=1 // pred_check
      _
    $region7: #{tpu_custom_call.1} parent=1 // pred_check_branch
      %21 = sbr.rel (0) target = $region9
    $region8: #{tpu_custom_call.1} parent=1 // pred_region
      %s22 = sadd.s32 0, 0
      %p23 = scmp.lt.s32.totalorder %s22, 0
      %s24 = scalar_select %p23, %s22, 0
      %p25 = scmp.lt.s32.totalorder %s24, 0
      %s26 = scalar_select %p25, %s24, 0
      %s27 = smul.addr %s26, 8
      %s28 = scalar_lea.vmem %s1, %s27
      %s29 = sadd.s32 0, 0
      %p30 = scmp.lt.s32.totalorder %s29, 0
      %s31 = scalar_select %p30, %s29, 0
    $region9: #{tpu_custom_call.1} parent=1 // pred_fallthru
      _
    %s32 = sadd.s32 0, 0
    %p33 = scmp.lt.s32.totalorder %s32, 0
    %s34 = scalar_select %p33, %s32, 0
    %p35 = scmp.lt.s32.totalorder %s34, 0
    %s36 = scalar_select %p35, %s34, 0
    %s37 = smul.addr %s36, 8
    %s38 = scalar_lea.vmem %s0, %s37
    %s39 = sadd.s32 0, 0
    %p40 = scmp.lt.s32.totalorder %s39, 0
    %s41 = scalar_select %p40, %s39, 0
    %p42 = scmp.lt.s32.totalorder %s41, 0
    %s43 = scalar_select %p42, %s41, 0
    %s44 = smul.addr %s43, 8
    %s45 = scalar_lea.vmem %s1, %s44
    %s46 = sadd.s32 0, 0
    %p47 = scmp.lt.s32.totalorder %s46, 0
    %s48 = scalar_select %p47, %s46, 0
    %p49 = scmp.lt.s32.totalorder %s48, 0
    %s50 = scalar_select %p49, %s48, 0
    %s51 = smul.addr %s50, 8
    %s52 = scalar_lea.vmem %s0, %s51
    %s53 = sadd.s32 0, 0
    %p54 = scmp.lt.s32.totalorder %s53, 0
    %s55 = scalar_select %p54, %s53, 0
    %s56 = sadd.s32 0, 0
    %p57 = scmp.lt.s32.totalorder %s56, 0
    %s58 = scalar_select %p57, %s56, 0
    %p59 = scmp.lt.s32.totalorder %s58, 0
    %s60 = scalar_select %p59, %s58, 0
    %s61 = smul.addr %s60, 8
    %s62 = scalar_lea.vmem %s1, %s61
    %s63 = sadd.s32 0, 0
    %p64 = scmp.lt.s32.totalorder %s63, 0
    %s65 = scalar_select %p64, %s63, 0
    %p66 = scmp.eq.s32.totalorder 0, 0
    // Predicated region
    $region10: #{tpu_custom_call.1} parent=1 // pred_check
      %p67 = pneg %p66
    $region11: #{tpu_custom_call.1} parent=1 // pred_check_branch
      %69 = sbr.rel (%p67) target = $region13
    $region12: #{tpu_custom_call.1} parent=1 // pred_region
      %70 = vst [vmem:[#allocation2] sm:$0xff] 0.0
    $region13: #{tpu_custom_call.1} parent=1 // pred_fallthru
      _
    %v71 = vld [vmem:[%s52] sm:$0xff]
    %vm72 = vcmask 130048
    %v73 = vsel %vm72, %v71, -inf
    %74 = vmax.xlane.f32.xlu0 %v73
    %v75 = vpop.xlane.xlu0 %74
    %v76 = vlaneseq
    %v77 = vand.u32 %v76, 127
    %vm78 = vcmp.eq.f32.partialorder %v71, %v75
    %v79 = vsel %vm78, %v77, 16
    %v80 = vsel %vm72, %v79, 2147483647
    %v81 = vand.u32 %v80, 65535
    %v82 = vshra.s32 %v80, 16
    %v83 = vcvt.s32.f32 %v81
    %v84 = vcvt.s32.f32 %v82
    %85 = vmin.xlane.f32.xlu0 %v84
    %v86 = vpop.xlane.xlu0 %85
    %vm87 = vcmp.eq.f32.partialorder %v84, %v86
    %v88 = vsel %vm87, %v83, inf
    %89 = vmin.xlane.f32.xlu0 %v88
    %v90 = vpop.xlane.xlu0 %89
    %v91 = vcvt.f32.s32 %v90
    %v92 = vcvt.f32.s32 %v86
    %v93 = vshll.u32 %v92, 16
    %v94 = vadd.s32 %v93, %v91
    %v95 = vld [vmem:[%s62] sm:$0xff]
    %vm96 = vcmp.eq.s32.totalorder %v94, %v95
    %v97 = vsel %vm96, 1, 0
    %v98 = vcvt.s32.f32 %v97
    %s99 = sadd.s32 0, 0
    %s100 = smul.u32 %s99, 8
    %v101 = vlaneseq
    %v102 = vshrl.u32 %v101, 7
    %v103 = vstv %s100
    %v104 = vadd.s32 %v103, %v102
    %vm105 = vcmp.lt.s32.totalorder %v104, 8
    %v106 = vsel %vm105, %v75, -1.0
    %v107 = vcvt.s32.f32 %v77
    %vm108 = vcmp.lt.s32.totalorder %v77, 20
    %v109 = vrcp.pop 20.0
    %v110 = vmul.f32 20.0, %v109
    %v111 = vsub.f32 1.0, %v110
    %v112 = vmul.f32 %v109, %v111
    %v113 = vadd.f32 %v109, %v112
    %vm114 = vweird.f32 %v109
    %v115 = vsel %vm114, %v109, %v113
    %v116 = vmul.f32 %v107, %v115
    %v117 = vsel %vm108, %v116, 1.0
    %v118 = vadd.f32 %v107, 1.0
    %v119 = vmul.f32 %v118, %v115
    %v120 = vsel %vm108, %v119, 0.0
    %vm121 = vcmp.gt.f32.partialorder %v106, %v117
    %vm122 = vcmp.le.f32.partialorder %v106, %v120
    %vm123 = vmand %vm121, %vm122
    %v124 = vsel %vm123, 1, 0
    %v125 = vcvt.s32.f32 %v124
    %v126 = vrot.slane %v125, 4
    %v127 = vadd.f32 %v125, %v126
    %v128 = vrot.slane %v127, 2
    %v129 = vadd.f32 %v127, %v128
    %v130 = vrot.slane %v129, 1
    %v131 = vadd.f32 %v129, %v130
    %133 = vset.pattern.permute.xlu0 0
    %134 = vperm.xlu0 %133, %v98
    %v135 = vpop.permute.xlu0 %134
    %v137 = vmul.f32 %v135, %v125
    %v138 = vrot.slane %v137, 4
    %v139 = vadd.f32 %v137, %v138
    %v140 = vrot.slane %v139, 2
    %v141 = vadd.f32 %v139, %v140
    %v142 = vrot.slane %v141, 1
    %v143 = vadd.f32 %v141, %v142
    %v144 = vmul.f32 %v106, %v125
    %v145 = vrot.slane %v144, 4
    %v146 = vadd.f32 %v144, %v145
    %v147 = vrot.slane %v146, 2
    %v148 = vadd.f32 %v146, %v147
    %v149 = vrot.slane %v148, 1
    %v150 = vadd.f32 %v148, %v149
    %vm151 = vcmask 1040384
    %v152 = vsel %vm151, %v131, %v143
    %vm153 = vcmask 1041408
    %v154 = vsel %vm153, %v152, %v150
    %vm155 = vcmask 1042432
    %v156 = vsel %vm155, %v154, 0.0
    %v157 = vld [vmem:[#allocation2] sm:$0xff]
    %v158 = vadd.f32 %v157, %v156
    %159 = vst [vmem:[#allocation2] sm:$0xff] %v158
    // Predicated region
    $region14: #{tpu_custom_call.1} parent=1 // pred_check
      _
    $region15: #{tpu_custom_call.1} parent=1 // pred_check_branch
      %161 = sbr.rel (0) target = $region17
    $region16: #{tpu_custom_call.1} parent=1 // pred_region
      %163 = vsyncadd [#allocation3], 0
      %s165 = sshll.u32 [#allocation2], 4
      %s166 = int_to_ptr.vmem [resolvable:$true] %s165
      %s167 = sshll.u32 %s2, 4
      %s168 = int_to_ptr.hbm [resolvable:$true] %s167
      %170 = dma.vmem_to_hbm [thread:$0]  %s166, 128, %s168, [#allocation3]
    $region17: #{tpu_custom_call.1} parent=1 // pred_fallthru
      _
    // Predicated region
    $region18: #{tpu_custom_call.1} parent=1 // pred_check
      _
    $region19: #{tpu_custom_call.1} parent=1 // pred_check_branch
      %172 = sbr.rel (0) target = $region21
    $region20: #{tpu_custom_call.1} parent=1 // pred_region
      %174 = dma.done [#allocation3], 128
    $region21: #{tpu_custom_call.1} parent=1 // pred_fallthru
      _
    %175 = vsyncpa [#allocation3], 1

</llo_original>
